<compile_context>
chip_gen: v7x
topology: tpu7x:2x2x1
jax: 0.10.0
libtpu: 0.0.40
codegen_flags: <defaults>
</compile_context>

<pallas_src>
import functools
import math

import jax
import jax.numpy as jnp
import numpy as np
from jax.experimental import pallas as pl
from jax.experimental.pallas import tpu as pltpu


_TARGET_X_BLOCK_BYTES = 4 << 20   # ~4 MiB x blocks: amortizes ~0.35 us/step, near roofline
_MAX_FUSED_BLOCK_BYTES = 6 << 20  # cap for a forced (8, B*D) block when B*D % 128 != 0
_VMEM_LIMIT_BYTES = 48 << 20      # safe on v7x (64 MiB physical) and v5e/v6e (128 MiB)
_MIN_GRID_STEPS = 4               # feed the double buffer + both v7x TensorCores


def _round_down(v: int, m: int) -> int:
    return (v // m) * m


def _round_up(v: int, m: int) -> int:
    return -(-v // m) * m


# --------------------------------------------------------------------------- #
# Host-side buffers (analogue of the registered buffer built in __init__).
# --------------------------------------------------------------------------- #
def build_pe_buffer(d_model: int, max_len: int = 5000, dtype=jnp.float32) -> jnp.ndarray:
    """Sinusoidal PE buffer, PACKED shape (max_len, d_model) (unit dim squeezed at init)."""
    position = np.arange(max_len, dtype=np.float32)[:, None]
    div_term = np.exp(
        np.arange(0, d_model, 2, dtype=np.float32) * (-math.log(10000.0) / d_model)
    )
    angles = position * div_term                       # (max_len, ceil(D/2))
    pe = np.zeros((max_len, d_model), np.float32)
    pe[:, 0::2] = np.sin(angles)
    pe[:, 1::2] = np.cos(angles[:, : d_model // 2])    # safe for odd d_model too
    return jnp.asarray(pe, dtype=dtype)


@functools.lru_cache(maxsize=None)
def _pe_lane_params(d_model: int, batch: int):
    """Per-lane frequency / phase rows for the flattened (B*D) lane layout.

    lane l = b*D + d  ->  pe[pos, l] = sin(pos * freq[l] + phase[l])
      freq[l]  = exp(-2*(d//2) * ln(10000) / D)
      phase[l] = 0 for even d (sin), pi/2 for odd d (cos(x) == sin(x + pi/2)).
    Tiny (a few KiB); cached per (D, B) like a registered buffer.
    """
    d = np.arange(d_model)
    freq = np.exp((2 * (d // 2)).astype(np.float32) * (-math.log(10000.0) / d_model))
    phase = np.where(d % 2 == 0, np.float32(0.0), np.float32(math.pi / 2.0))
    freq_row = np.tile(freq, batch)[None, :].astype(np.float32)    # (1, B*D)
    phase_row = np.tile(phase, batch)[None, :].astype(np.float32)  # (1, B*D)
    return jnp.asarray(freq_row), jnp.asarray(phase_row)


# --------------------------------------------------------------------------- #
# Kernels
# --------------------------------------------------------------------------- #
def _pe_fused_kernel(x_ref, freq_ref, phase_ref, o_ref):
    # x_ref / o_ref: (ts, tbd) lane-dense blocks of the (S, B*D) view.
    # freq_ref / phase_ref: (1, tbd) per-lane rows, broadcast over the seq tile.
    ts, tbd = x_ref.shape
    pos = (pl.program_id(0) * ts
           + jax.lax.broadcasted_iota(jnp.int32, (ts, tbd), 0)).astype(jnp.float32)
    # TODO(synk): verify with a bundle dump that jnp.sin stays off the critical VALU path on
    # v7x (3.2 TB/s halves the VALU slack); if it lowers to a long polynomial, prefer the
    # buffer path there for B >= 4.
    pe = jnp.sin(pos * freq_ref[...] + phase_ref[...])
    o_ref[...] = (x_ref[...].astype(jnp.float32) + pe).astype(o_ref.dtype)


def _pe_buffer_kernel(x_ref, pe_ref, o_ref):
    # x_ref / o_ref: (ts, B, D); pe_ref: (ts, D) packed -> broadcast over the batch axis.
    o_ref[...] = (x_ref[...] + pe_ref[...][:, None, :]).astype(o_ref.dtype)


# --------------------------------------------------------------------------- #
# Wrappers
# --------------------------------------------------------------------------- #
def _forward_fused(x: jnp.ndarray) -> jnp.ndarray:
    """Lane-dense path: flatten (B, D) into lanes; synthesize pe in-kernel (no pe HBM stream)."""
    S, B, D = x.shape
    BD = B * D
    # Row-major collapse of the two minor dims. NOTE: verify in the HLO that this reshape
    # (and the one back) stays a bitcast for your producer's layout; a materialized relayout
    # would erase the fused path's traffic win.
    x2 = x.reshape(S, BD)
    freq_row, phase_row = _pe_lane_params(D, B)
    bytes_per = jnp.dtype(x.dtype).itemsize

    # Lane tile: full width unless an 8-row stripe would blow the target; lane tiling is only
    # legal when BD % 128 == 0 (the dispatcher guarantees forced full-width blocks stay small).
    tbd = BD
    if BD % 128 == 0 and 8 * BD * bytes_per > _TARGET_X_BLOCK_BYTES:
        tbd = min(BD, max(128, _round_down(_TARGET_X_BLOCK_BYTES // (8 * bytes_per), 128)))

    # Seq tile: biggest multiple of 8 near the target block size, but keep >= _MIN_GRID_STEPS
    # total grid steps when the shape allows (DMA overlap + v7x 2-TC sharding).
    ts = max(8, _round_down(max(8, _TARGET_X_BLOCK_BYTES // (tbd * bytes_per)), 8))
    lane_tiles = pl.cdiv(BD, tbd)
    if lane_tiles < _MIN_GRID_STEPS:
        steps = pl.cdiv(_MIN_GRID_STEPS, lane_tiles)
        ts = min(ts, max(8, _round_up(pl.cdiv(S, steps), 8)))
    if ts >= S:
        ts = S  # full-extent block (no 8-divisibility requirement then)
    grid = (pl.cdiv(S, ts), lane_tiles)

    out2 = pl.pallas_call(
        _pe_fused_kernel,
        out_shape=jax.ShapeDtypeStruct((S, BD), x.dtype),
        grid_spec=pltpu.PrefetchScalarGridSpec(
            num_scalar_prefetch=0,
            grid=grid,
            in_specs=[
                pl.BlockSpec((ts, tbd), lambda i, j: (i, j)),
                pl.BlockSpec((1, tbd), lambda i, j: (0, j)),
                pl.BlockSpec((1, tbd), lambda i, j: (0, j)),
            ],
            out_specs=pl.BlockSpec((ts, tbd), lambda i, j: (i, j)),
        ),
        compiler_params=pltpu.CompilerParams(
            dimension_semantics=("parallel", "parallel"),
            vmem_limit_bytes=_VMEM_LIMIT_BYTES,
        ),
    )(x2, freq_row, phase_row)
    return out2.reshape(S, B, D)


def _forward_buffer(x: jnp.ndarray, pe2d: jnp.ndarray) -> jnp.ndarray:
    """Buffer path: stream the packed (max_len, D) pe and broadcast over batch in-kernel."""
    S, B, D = x.shape
    if pe2d.dtype != x.dtype:
        pe2d = pe2d.astype(x.dtype)   # no-op when the buffer is built in the model dtype
    bytes_per = jnp.dtype(x.dtype).itemsize

    ts = max(1, _TARGET_X_BLOCK_BYTES // (B * D * bytes_per))
    ts = min(ts, pl.cdiv(S, _MIN_GRID_STEPS))   # keep >= _MIN_GRID_STEPS seq steps when possible
    ts = max(8, _round_down(ts, 8))             # multiple of 8: pe block's second-minor dim
    ts = min(ts, _round_down(S, 8))             # dispatcher guarantees S >= 8 here
    grid = (pl.cdiv(S, ts),)

    return pl.pallas_call(
        _pe_buffer_kernel,
        out_shape=jax.ShapeDtypeStruct((S, B, D), x.dtype),
        grid_spec=pltpu.PrefetchScalarGridSpec(
            num_scalar_prefetch=0,
            grid=grid,
            in_specs=[
                pl.BlockSpec((ts, B, D), lambda i: (i, 0, 0)),
                # Packed 2-D pe: only the first ceil(S/ts) blocks are ever visited, so there
                # is no host-side pe[:S] slice and no (.., 1, D) sublane padding in the DMA.
                pl.BlockSpec((ts, D), lambda i: (i, 0)),
            ],
            out_specs=pl.BlockSpec((ts, B, D), lambda i: (i, 0, 0)),
        ),
        compiler_params=pltpu.CompilerParams(
            dimension_semantics=("parallel",),
            vmem_limit_bytes=_VMEM_LIMIT_BYTES,
        ),
    )(x, pe2d)


def positional_encoding_forward(x: jnp.ndarray, pe: jnp.ndarray) -> jnp.ndarray:
    """x: (S, B, D); pe: packed (max_len, D) (or PyTorch-style (max_len, 1, D)).

    Returns x + pe[:S], broadcast over the batch axis (matches PositionalEncoding.forward).
    """
    S, B, D = x.shape
    pe2d = pe.reshape(pe.shape[0], pe.shape[-1]) if pe.ndim == 3 else pe
    if pe2d.shape[0] < S or pe2d.shape[1] != D:
        raise ValueError(f"pe buffer {pe.shape} incompatible with x {x.shape}")

    bytes_per = jnp.dtype(x.dtype).itemsize
    BD = B * D
    # Dispatch on LAYOUT: the 3-D buffer path is lane/sublane dense only when D % 128 == 0 and
    # B % 8 == 0; everything else goes to the flattened fused path (unmasked lane-dense stores),
    # unless a forced full-width (<=8, B*D) block would be unreasonably large.
    dense_3d = (D % 128 == 0) and (B % 8 == 0) and (S >= 8)
    fused_ok = (BD % 128 == 0) or (min(8, S) * BD * bytes_per <= _MAX_FUSED_BLOCK_BYTES)
    if dense_3d or (not fused_ok and S >= 8):
        return _forward_buffer(x, pe2d)
    return _forward_fused(x)


# --------------------------------------------------------------------------- #
# Demo / self-check
# --------------------------------------------------------------------------- #
if __name__ == "__main__":
    MAX_LEN = 64   # module default is 5000; small buffer for the synthetic test
    key = jax.random.PRNGKey(0)
    k1, k2, k3 = jax.random.split(key, 3)

    def reference(x, pe2d):
        return x + pe2d[: x.shape[0]][:, None, :]

    # 1) Fused lane-dense path (D % 128 != 0): pe synthesized in-kernel.
    D1 = 32
    pe1 = build_pe_buffer(D1, max_len=MAX_LEN)
    x1 = jax.random.normal(k1, (8, 2, D1), dtype=jnp.float32)
    o1 = jax.block_until_ready(positional_encoding_forward(x1, pe1))
    r1 = reference(x1, pe1)
    assert o1.shape == x1.shape
    assert jnp.allclose(o1, r1, atol=1e-5, rtol=1e-5), float(jnp.max(jnp.abs(o1 - r1)))

    # 2) Dense 3-D buffer path (B % 8 == 0, D % 128 == 0): streams the packed 2-D pe buffer.
    D2 = 128
    pe2 = build_pe_buffer(D2, max_len=MAX_LEN)
    x2 = jax.random.normal(k2, (16, 8, D2), dtype=jnp.float32)
    o2 = jax.block_until_ready(positional_encoding_forward(x2, pe2))
    r2 = reference(x2, pe2)
    assert o2.shape == x2.shape
    assert jnp.allclose(o2, r2, atol=1e-6, rtol=1e-6)

    # 3) Fused path with ragged shapes (B*D % 128 != 0, S % 8 != 0): partial last seq block.
    D3 = 40
    pe3 = build_pe_buffer(D3, max_len=MAX_LEN)
    x3 = jax.random.normal(k3, (12, 3, D3), dtype=jnp.float32)
    o3 = jax.block_until_ready(positional_encoding_forward(x3, pe3))
    r3 = reference(x3, pe3)
    assert o3.shape == x3.shape
    assert jnp.allclose(o3, r3, atol=1e-5, rtol=1e-5), float(jnp.max(jnp.abs(o3 - r3)))

    print("KERNEL_OK")
</pallas_src>

<mosaic_0001>
module attributes {stable_mosaic.version = 11 : i64} {
  func.func @_pe_fused_kernel(%arg0: i32, %arg1: i32, %arg2: memref<8x64xf32, #tpu.memory_space<vmem>>, %arg3: memref<1x64xf32, #tpu.memory_space<vmem>>, %arg4: memref<1x64xf32, #tpu.memory_space<vmem>>, %arg5: memref<8x64xf32, #tpu.memory_space<vmem>>) attributes {dimension_semantics = [#tpu.dimension_semantics<parallel>, #tpu.dimension_semantics<parallel>], iteration_bounds = array<i64: 1, 1>, scalar_prefetch = 0 : i64, scratch_operands = 0 : i64, tpu.core_type = #tpu.core_type<tc>, window_params = [{transform_indices = @transform_0, window_bounds = array<i64: 8, 64>}, {transform_indices = @transform_1, window_bounds = array<i64: 1, 64>}, {transform_indices = @transform_2, window_bounds = array<i64: 1, 64>}, {transform_indices = @transform_3, window_bounds = array<i64: 8, 64>}]} {
    %c8_i32 = arith.constant 8 : i32
    %0 = arith.muli %arg0, %c8_i32 : i32
    %1 = tpu.iota {dimensions = array<i32: 0>} : vector<8x64xi32>
    %2 = vector.broadcast %0 : i32 to vector<8x64xi32>
    %3 = arith.addi %2, %1 : vector<8x64xi32>
    %4 = arith.sitofp %3 : vector<8x64xi32> to vector<8x64xf32>
    %c0 = arith.constant 0 : index
    %c0_0 = arith.constant 0 : index
    %5 = vector.load %arg3[%c0, %c0_0] : memref<1x64xf32, #tpu.memory_space<vmem>>, vector<1x64xf32>
    %6 = vector.broadcast %5 : vector<1x64xf32> to vector<8x64xf32>
    %7 = arith.mulf %4, %6 : vector<8x64xf32>
    %c0_1 = arith.constant 0 : index
    %c0_2 = arith.constant 0 : index
    %8 = vector.load %arg4[%c0_1, %c0_2] : memref<1x64xf32, #tpu.memory_space<vmem>>, vector<1x64xf32>
    %9 = vector.broadcast %8 : vector<1x64xf32> to vector<8x64xf32>
    %10 = arith.addf %7, %9 : vector<8x64xf32>
    %11 = math.sin %10 : vector<8x64xf32>
    %c0_3 = arith.constant 0 : index
    %c0_4 = arith.constant 0 : index
    %12 = vector.load %arg2[%c0_3, %c0_4] : memref<8x64xf32, #tpu.memory_space<vmem>>, vector<8x64xf32>
    %13 = arith.addf %12, %11 : vector<8x64xf32>
    %c0_5 = arith.constant 0 : index
    %c0_6 = arith.constant 0 : index
    %14 = vector.load %arg5[%c0_5, %c0_6] : memref<8x64xf32, #tpu.memory_space<vmem>>, vector<8x64xf32>
    tpu.vector_store %arg5[%c0_5, %c0_6], %13 {strides = array<i32>} : memref<8x64xf32, #tpu.memory_space<vmem>>, vector<8x64xf32>,
    return
  }
  func.func @transform_0(%arg0: i32, %arg1: i32) -> (i32, i32) {
    %c0_i32 = arith.constant 0 : i32
    return %arg0, %arg1 : i32, i32
  }
  func.func @transform_1(%arg0: i32, %arg1: i32) -> (i32, i32) {
    %c0_i32 = arith.constant 0 : i32
    %c0_i32_0 = arith.constant 0 : i32
    return %c0_i32, %arg1 : i32, i32
  }
  func.func @transform_2(%arg0: i32, %arg1: i32) -> (i32, i32) {
    %c0_i32 = arith.constant 0 : i32
    %c0_i32_0 = arith.constant 0 : i32
    return %c0_i32, %arg1 : i32, i32
  }
  func.func @transform_3(%arg0: i32, %arg1: i32) -> (i32, i32) {
    %c0_i32 = arith.constant 0 : i32
    return %arg0, %arg1 : i32, i32
  }
}

</mosaic_0001>

<llo_original>
// kernel: tpu_custom_call.1
$region0: #{tpu_custom_call.1}
  #allocation0 [shape = 'u32[]', space=smem, size = 0x4, offset = 0x4, fixed_abs, tag = 'smem constant byte address 0x4 - core index']
  #allocation1 [shape = 'u32[144,128]{1,0:T(1,128)}', space=vmem, size = 0x12000, scoped, tag = 'internal scratch']
  %s0 = inlined_call_operand.hbm [shape: f32[8,64], index: 0, kind: input, shape index: {}]
  %s1 = inlined_call_operand.vmem [shape: f32[1,64], index: 1, kind: input, shape index: {}]
  %s2 = inlined_call_operand.vmem [shape: f32[1,64], index: 2, kind: input, shape index: {}]
  %s3 = inlined_call_operand.hbm [shape: f32[8,64], index: 3, kind: output, shape index: {}]
  %s4 = sld [smem:[#allocation0]]
  $region26: #{tpu_custom_call.1} parent=0
    _
  %s6 = ssub.s32 1, %s4
  %s7 = scalar_select 0, %s6, %s4
  $region1: #{tpu_custom_call.1} parent=0
    #allocation2 [shape = 'u8[4096]{0}', space=vmem, size = 0x1000, scoped, tag = 'input window, operand 0, single buffered']
    #allocation3 [shape = 's32[1]{0}', space=sflag, size = 0x4, scoped, tag = 'scoped memory for tpu_custom_call.1']
    #allocation4 [shape = 's32[1]{0}', space=sflag, size = 0x4, scoped, tag = 'scoped memory for tpu_custom_call.1']
    #allocation5 [shape = 'u8[4096]{0}', space=vmem, size = 0x1000, scoped, tag = 'output window, operand 0, single buffered']
    %8 = vsyncpa [#allocation3], 0
    %9 = vsyncpa [#allocation4], 0
    // Predicated region
    $region2: #{tpu_custom_call.1} parent=1 // pred_check
      _
    $region3: #{tpu_custom_call.1} parent=1 // pred_check_branch
      %11 = sbr.rel (0) target = $region5
    $region4: #{tpu_custom_call.1} parent=1 // pred_region
      %s13 = ssub.s32 128, 128
      %14 = vsyncadd [#allocation3], %s13
      %s16 = sshll.u32 [#allocation2], 4
      %s17 = int_to_ptr.vmem [resolvable:$true] %s16
      %19 = dma.hbm_to_vmem [thread:$0]  %s0, 128, %s17, [#allocation3]
    $region5: #{tpu_custom_call.1} parent=1 // pred_fallthru
      _
    // Predicated region
    $region6: #{tpu_custom_call.1} parent=1 // pred_check
      _
    $region7: #{tpu_custom_call.1} parent=1 // pred_check_branch
      %21 = sbr.rel (0) target = $region9
    $region8: #{tpu_custom_call.1} parent=1 // pred_region
      _
    $region9: #{tpu_custom_call.1} parent=1 // pred_fallthru
      _
    // Predicated region
    $region10: #{tpu_custom_call.1} parent=1 // pred_check
      _
    $region11: #{tpu_custom_call.1} parent=1 // pred_check_branch
      %23 = sbr.rel (0) target = $region13
    $region12: #{tpu_custom_call.1} parent=1 // pred_region
      _
    $region13: #{tpu_custom_call.1} parent=1 // pred_fallthru
      _
    // Predicated region
    $region14: #{tpu_custom_call.1} parent=1 // pred_check
      _
    $region15: #{tpu_custom_call.1} parent=1 // pred_check_branch
      %25 = sbr.rel (0) target = $region17
    $region16: #{tpu_custom_call.1} parent=1 // pred_region
      %26 = dma.done [#allocation3], 128
    $region17: #{tpu_custom_call.1} parent=1 // pred_fallthru
      _
    %s27 = smul.u32 0, 8
    %v28 = vlaneseq
    %v29 = vshrl.u32 %v28, 7
    %v30 = vstv %s27
    %v31 = vadd.s32 %v30, %v29
    %v32 = vcvt.s32.f32 %v31
    %v33 = vld [vmem:[%s1] sm:$0x1]
    %v35 = vlaneseq
    %v36 = vshrl.u32 %v35, 7
    %v37 = vsub.s32 0, %v36
    %v38 = vrot.slane %v33, %v37
    %v40 = vmul.f32 %v32, %v38
    %v41 = vld [vmem:[%s2] sm:$0x1]
    %v43 = vlaneseq
    %v44 = vshrl.u32 %v43, 7
    %v45 = vsub.s32 0, %v44
    %v46 = vrot.slane %v41, %v45
    %v48 = vadd.f32 %v40, %v46
    %v49 = vand.u32 2147483647, %v48
    %vm50 = vcmp.le.f32.partialorder %v49, 0.7853982
    %vm51 = vcmp.lt.s32.totalorder %v48, 0
    %v52 = vand.u32 %v48, 2139095040
    %v53 = vshrl.u32 %v52, 23
    %v54 = vsub.s32 %v53, 127
    %v55 = vand.u32 2147483647, %v48
    %v56 = vand.u32 %v55, 8388607
    %v57 = vor.u32 %v56, 8388608
    %v58 = vsub.s32 0, %v57
    %v59 = vadd.s32 %v54, 1
    %vm60 = vcmp.gt.s32.totalorder %v59, 0
    %v61 = vsel %vm60, %v59, 0
    %v62 = vshrl.u32 %v61, 5
    %v63 = vand.u32 %v61, 31
    %v64 = vsub.s32 32, %v63
    %v65 = vshrl.u32 683565275, %v64
    %v66 = vshll.u32 683565275, %v63
    %v67 = vshrl.u32 2475754826, %v64
    %v68 = vor.u32 %v66, %v67
    %v69 = vshll.u32 2475754826, %v63
    %v70 = vshrl.u32 2131351028, %v64
    %v71 = vor.u32 %v69, %v70
    %v72 = vshll.u32 2131351028, %v63
    %v73 = vshrl.u32 2102212464, %v64
    %v74 = vor.u32 %v72, %v73
    %v75 = vshll.u32 2102212464, %v63
    %v76 = vshrl.u32 920167782, %v64
    %v77 = vor.u32 %v75, %v76
    %v78 = vshll.u32 920167782, %v63
    %v79 = vshrl.u32 1326507024, %v64
    %v80 = vor.u32 %v78, %v79
    %vm81 = vcmp.lt.s32.totalorder %v62, 1
    %vm82 = vcmp.lt.s32.totalorder %v62, 2
    %vm83 = vcmp.lt.s32.totalorder %v62, 3
    %vm84 = vcmp.lt.s32.totalorder %v62, 4
    %v85 = vsel %vm81, %v65, %v68
    %v86 = vsel %vm84, %v74, 2102212464
    %v87 = vsel %vm83, %v71, %v86
    %v88 = vsel %vm82, %v85, %v87
    %v89 = vsel %vm81, %v68, %v71
    %v90 = vsel %vm84, %v77, 920167782
    %v91 = vsel %vm83, %v74, %v90
    %v92 = vsel %vm82, %v89, %v91
    %v93 = vsel %vm81, %v71, %v74
    %v94 = vsel %vm84, %v80, 1326507024
    %v95 = vsel %vm83, %v77, %v94
    %v96 = vsel %vm82, %v93, %v95
    %v97 = vshll.u32 %v57, 8
    %v98 = vmul.u32.u64.compose %v97, %v96
    %v99 = vextract.low.u32 %v98
    %v100 = vextract.high.u32 %v98
    %v101 = vmul.u32.u64.compose %v97, %v92
    %v102 = vextract.low.u32 %v101
    %v103 = vextract.high.u32 %v101
    %v104 = vmul.u32 %v97, %v88
    %v105 = vadd.s32 %v100, %v102
    %vm106 = vc.u32 %v100, %v102
    %v107 = vadd.s32 %v103, 1
    %v108 = vsel %vm106, %v107, %v103
    %v109 = vadd.s32 %v104, %v108
    %v110 = vadd.s32 %v109, 536870912
    %v111 = vshrl.u32 %v110, 30
    %v112 = vshll.u32 %v111, 30
    %v113 = vsub.s32 %v109, %v112
    %vm114 = vcmp.lt.s32.totalorder %v113, 0
    %v115 = vsub.s32 0, %v113
    %v116 = vsel %vm114, %v115, %v113
    %v117 = vclz %v116
    %v118 = vsub.s32 %v117, 2
    %vm119 = vcmp.gt.s32.totalorder 0, %v118
    %v120 = vsel %vm119, 0, %v118
    %v121 = vsub.s32 32, %v120
    %v122 = vshll.u32 %v113, %v120
    %v123 = vshrl.u32 %v105, %v121
    %v124 = vor.u32 %v122, %v123
    %v125 = vsub.s32 4294967266, %v120
    %v126 = vadd.s32 %v125, 127
    %v127 = vshll.u32 %v126, 23
    %v128 = vor.u32 4788187, %v127
    %v129 = vand.u32 2147483647, %v128
    %v131 = vcvt.s32.f32 %v124
    %v132 = vmul.f32 %v131, %v129
    %v133 = vxor.u32 %v132, 2147483648
    %v134 = vsel %vm51, %v133, %v132
    %v135 = vsub.s32 4, %v111
    %v136 = vsel %vm51, %v135, %v111
    %v137 = vsel %vm50, %v48, %v134
    %v138 = vsel %vm50, 0, %v136
    %v139 = vcosq.f32.pop %v137
    %v140 = vsinq.f32.pop %v137
    %vm141 = vweird.f32 %v48
    %v142 = vadd.s32 %v138, 3
    %v143 = vand.u32 %v142, 3
    %vm144 = vcmp.lt.s32.totalorder %v143, 2
    %vm145 = vcmp.eq.s32.totalorder %v143, 0
    %v146 = vxor.u32 %v140, 2147483648
    %v147 = vsel %vm145, %v139, %v146
    %vm148 = vcmp.eq.s32.totalorder %v143, 2
    %v149 = vxor.u32 %v139, 2147483648
    %v150 = vsel %vm148, %v149, %v140
    %v151 = vsel %vm144, %v147, %v150
    %v152 = vsel %vm141, nan, %v151
    %v153 = vld [vmem:[#allocation2] sm:$0xff]
    %v154 = vadd.f32 %v153, %v152
    %vm155 = vcmask 523264
    %156 = vst.msk [vmem:[#allocation5] sm:$0xff] %vm155, %v154
    // Predicated region
    $region18: #{tpu_custom_call.1} parent=1 // pred_check
      _
    $region19: #{tpu_custom_call.1} parent=1 // pred_check_branch
      %158 = sbr.rel (0) target = $region21
    $region20: #{tpu_custom_call.1} parent=1 // pred_region
      %s160 = ssub.s32 128, 128
      %161 = vsyncadd [#allocation4], %s160
      %s163 = sshll.u32 [#allocation5], 4
      %s164 = int_to_ptr.vmem [resolvable:$true] %s163
      %166 = dma.vmem_to_hbm [thread:$0]  %s164, 128, %s3, [#allocation4]
    $region21: #{tpu_custom_call.1} parent=1 // pred_fallthru
      _
    // Predicated region
    $region22: #{tpu_custom_call.1} parent=1 // pred_check
      _
    $region23: #{tpu_custom_call.1} parent=1 // pred_check_branch
      %168 = sbr.rel (0) target = $region25
    $region24: #{tpu_custom_call.1} parent=1 // pred_region
      %169 = dma.done [#allocation4], 128
    $region25: #{tpu_custom_call.1} parent=1 // pred_fallthru
      _
    %170 = vsyncpa [#allocation3], 1
    %171 = vsyncpa [#allocation4], 1

</llo_original>
